<compile_context>
chip_gen: v5e
topology: v5e:2x2
jax: 0.10.0
libtpu: 0.0.40
codegen_flags: <defaults>
</compile_context>

<pallas_src>
import functools

import jax
import jax.numpy as jnp
from jax import lax
from jax.experimental import pallas as pl
from jax.experimental.pallas import tpu as pltpu

NEG_SLOPE = 0.01  # torch.nn.LeakyReLU default negative_slope


def _leaky_relu(h):
    # mul + max (2 VALU ops) instead of cmp + mul + select.
    return jnp.maximum(h, NEG_SLOPE * h)


def _resnet_dense_kernel(x_ref, wf_ref, bf_ref, *rest, n_rest: int, hidden: int):
    """out = residual + LeakyReLU-stack(x), with residual and layer-0 fused.

    rest = (wl_ref, bl_ref, out_ref) if n_rest > 0 else (out_ref,)
    """
    out_ref = rest[-1]
    x = x_ref[...]                                        # (TB, Din) bf16

    # Fused first matmul: RHS = concat([W_res, W_layer0], axis=1) -> (Din, 2H).
    y = jnp.dot(x, wf_ref[...],
                preferred_element_type=jnp.float32) + bf_ref[...]   # (TB, 2H) f32
    res = y[:, :hidden]                                   # residual path (pre-add)
    h = _leaky_relu(y[:, hidden:])                        # layer-0 output

    if n_rest > 0:
        wl_ref, bl_ref = rest[0], rest[1]

        def layer(l, h):
            hb = jnp.dot(h.astype(wl_ref.dtype), wl_ref[l],
                         preferred_element_type=jnp.float32) + bl_ref[l]
            return _leaky_relu(hb)

        if n_rest <= 4:
            for l in range(n_rest):                       # short static unroll
                h = layer(l, h)
        else:
            h = lax.fori_loop(0, n_rest, layer, h)        # compact body, no bloat

    out_ref[...] = (res + h).astype(out_ref.dtype)


def _const_spec(shape, index_map):
    """BlockSpec for blocks whose index_map is constant across the grid.

    Single-buffer them (they are fetched once and stay resident), halving their
    VMEM footprint vs. the default double-buffering.  Falls back gracefully if
    pipeline_mode is unavailable in the installed JAX.
    """
    try:
        return pl.BlockSpec(shape, index_map, pipeline_mode=pl.Buffered(1))
    except (TypeError, AttributeError):
        return pl.BlockSpec(shape, index_map)


def _pick_block_b(B: int) -> int:
    """Pick the batch tile.

    Big enough to fill the MXU rows; for larger batches keep >= 2 grid steps so
    the "parallel" grid axis can be sharded across v7x's two TensorCores; tiles
    are multiples of 16 (bf16 sublane packing).  Tiny batches use one step.
    """
    if B <= 128:
        return B
    for tb in (512, 256, 128, 64, 32, 16):
        if B % tb == 0 and B // tb >= 2:
            return tb
    return B


def resnet_dense(x, w_res, b_res, w_layers, b_layers, *, block_b=None):
    """Pallas-backed ResNetDense.forward(x).

    x:        (B, Din)    f32
    w_res:    (Din, H)    f32   (residual Linear, stored (in, out))
    b_res:    (1, H)      f32
    w_layers: (L, H, H)   f32   (stacked per-layer Linear weights, (in, out))
    b_layers: (L, 1, H)   f32
    returns:  (B, H)      f32
    """
    B, Din = x.shape
    H = w_res.shape[1]
    L = int(w_layers.shape[0])
    assert Din == H, "torch forward applies Linear(hidden, hidden) directly to x"
    assert H % 128 == 0, "keep hidden a multiple of 128 (lane-dense tiles)"
    assert L >= 1

    tb = _pick_block_b(B) if block_b is None else block_b
    assert B % tb == 0, "batch must be divisible by the batch tile"
    assert tb == B or tb % 16 == 0, "bf16 tiles need batch-tile multiples of 16"

    bf16 = jnp.bfloat16
    x_bf = x.astype(bf16)
    # Fused RHS/bias for (residual | layer 0); remaining layers stay stacked.
    w_fused = jnp.concatenate([w_res, w_layers[0]], axis=1).astype(bf16)  # (Din, 2H)
    b_fused = jnp.concatenate([b_res, b_layers[0]], axis=1)               # (1, 2H) f32

    n_rest = L - 1
    args = [x_bf, w_fused, b_fused]
    in_specs = [
        pl.BlockSpec((tb, Din), lambda i: (i, 0)),          # x: batch-tiled LHS
        _const_spec((Din, 2 * H), lambda i: (0, 0)),        # fused RHS, resident
        _const_spec((1, 2 * H), lambda i: (0, 0)),          # fused bias, resident
    ]
    rest_weight_bytes = 0
    rest_bias_bytes = 0
    if n_rest > 0:
        w_rest = w_layers[1:].astype(bf16)                  # (L-1, H, H) bf16
        b_rest = b_layers[1:]                                # (L-1, 1, H) f32
        args += [w_rest, b_rest]
        in_specs += [
            _const_spec((n_rest, H, H), lambda i: (0, 0, 0)),
            _const_spec((n_rest, 1, H), lambda i: (0, 0, 0)),
        ]
        rest_weight_bytes = w_rest.size * 2
        rest_bias_bytes = b_rest.size * 4

    # VMEM budget: resident weights/biases + double-buffered x/out tiles
    # (+ slack for the (tb, 2H) f32 intermediate).
    weight_bytes = w_fused.size * 2 + rest_weight_bytes
    bias_bytes = b_fused.size * 4 + rest_bias_bytes
    io_bytes = 2 * (tb * Din * 2 + tb * 2 * H * 4)
    vmem_limit = min(128 << 20,
                     int(1.25 * (weight_bytes + bias_bytes + io_bytes)) + (8 << 20))

    flops = 2 * B * Din * H * (L + 1)
    bytes_accessed = (x_bf.size * 2 + weight_bytes + bias_bytes + B * H * 4)

    kernel = functools.partial(_resnet_dense_kernel, n_rest=n_rest, hidden=H)
    return pl.pallas_call(
        kernel,
        out_shape=jax.ShapeDtypeStruct((B, H), jnp.float32),
        grid=(B // tb,),
        in_specs=in_specs,
        out_specs=pl.BlockSpec((tb, H), lambda i: (i, 0)),   # lane-dense output
        compiler_params=pltpu.CompilerParams(
            dimension_semantics=("parallel",),               # megacore-shardable
            vmem_limit_bytes=vmem_limit),
        cost_estimate=pl.CostEstimate(
            flops=flops, transcendentals=0, bytes_accessed=bytes_accessed),
    )(*args)


def _reference_f32(x, w_res, b_res, w_layers, b_layers):
    """Pure-JAX f32 reference matching the PyTorch forward exactly."""
    res = x @ w_res + b_res
    h = x
    for l in range(w_layers.shape[0]):
        h = h @ w_layers[l] + b_layers[l]
        h = jnp.where(h >= 0.0, h, NEG_SLOPE * h)
    return res + h


def _reference_bf16(x, w_res, b_res, w_layers, b_layers):
    """Reference with the same bf16-input / f32-accumulation scheme as the kernel."""
    bf16 = jnp.bfloat16
    xb = x.astype(bf16)
    res = jnp.dot(xb, w_res.astype(bf16), preferred_element_type=jnp.float32) + b_res
    h = jnp.dot(xb, w_layers[0].astype(bf16),
                preferred_element_type=jnp.float32) + b_layers[0]
    h = _leaky_relu(h)
    for l in range(1, w_layers.shape[0]):
        h = jnp.dot(h.astype(bf16), w_layers[l].astype(bf16),
                    preferred_element_type=jnp.float32) + b_layers[l]
        h = _leaky_relu(h)
    return res + h


if __name__ == "__main__":
    key = jax.random.PRNGKey(0)
    kx, kwr, kbr, kwl, kbl = jax.random.split(key, 5)

    # Small, lane-aligned demo sizes (input_size == hidden_size is required by
    # the torch forward).  B=256 gives two grid steps at the auto-picked tile
    # of 128 rows, exercising both the v7x sharding path and the fused MXU dot.
    B, D, H, L = 256, 128, 128, 3
    x = jax.random.normal(kx, (B, D), dtype=jnp.float32)
    w_res = (1.0 / jnp.sqrt(D)) * jax.random.normal(kwr, (D, H), jnp.float32)
    b_res = 0.1 * jax.random.normal(kbr, (1, H), jnp.float32)
    w_layers = (1.0 / jnp.sqrt(H)) * jax.random.normal(kwl, (L, H, H), jnp.float32)
    b_layers = 0.1 * jax.random.normal(kbl, (L, 1, H), jnp.float32)

    out = resnet_dense(x, w_res, b_res, w_layers, b_layers)
    out = jax.block_until_ready(out)

    ref_bf = _reference_bf16(x, w_res, b_res, w_layers, b_layers)
    ref_32 = _reference_f32(x, w_res, b_res, w_layers, b_layers)

    assert out.shape == (B, H)
    assert bool(jnp.all(jnp.isfinite(out)))
    # Tight check vs. the matching bf16-input / f32-accum reference.
    assert jnp.allclose(out, ref_bf, atol=2e-3, rtol=2e-3)
    # Loose sanity check vs. the exact f32 PyTorch-equivalent reference
    # (expected ~1e-2-level drift from bf16 MXU inputs).
    assert jnp.allclose(out, ref_32, atol=6e-2, rtol=6e-2)

    print("KERNEL_OK")
</pallas_src>

<mosaic_0001>
module attributes {stable_mosaic.version = 11 : i64} {
  func.func @_resnet_dense_kernel(%arg0: i32, %arg1: memref<128x128xbf16, #tpu.memory_space<vmem>>, %arg2: memref<128x256xbf16, #tpu.memory_space<vmem>>, %arg3: memref<1x256xf32, #tpu.memory_space<vmem>>, %arg4: memref<2x128x128xbf16, #tpu.memory_space<vmem>>, %arg5: memref<2x1x128xf32, #tpu.memory_space<vmem>>, %arg6: memref<128x128xf32, #tpu.memory_space<vmem>>) attributes {dimension_semantics = [#tpu.dimension_semantics<parallel>], iteration_bounds = array<i64: 2>, scalar_prefetch = 0 : i64, scratch_operands = 0 : i64, tpu.core_type = #tpu.core_type<tc>, window_params = [{transform_indices = @transform_0, window_bounds = array<i64: 128, 128>}, {pipeline_mode = #tpu.pipeline_mode<synchronous>, transform_indices = @transform_1, window_bounds = array<i64: 128, 256>}, {pipeline_mode = #tpu.pipeline_mode<synchronous>, transform_indices = @transform_2, window_bounds = array<i64: 1, 256>}, {pipeline_mode = #tpu.pipeline_mode<synchronous>, transform_indices = @transform_3, window_bounds = array<i64: 2, 128, 128>}, {pipeline_mode = #tpu.pipeline_mode<synchronous>, transform_indices = @transform_4, window_bounds = array<i64: 2, 1, 128>}, {transform_indices = @transform_5, window_bounds = array<i64: 128, 128>}]} {
    %c0 = arith.constant 0 : index
    %c0_0 = arith.constant 0 : index
    %0 = vector.load %arg1[%c0, %c0_0] : memref<128x128xbf16, #tpu.memory_space<vmem>>, vector<128x128xbf16>
    %c0_1 = arith.constant 0 : index
    %c0_2 = arith.constant 0 : index
    %1 = vector.load %arg2[%c0_1, %c0_2] : memref<128x256xbf16, #tpu.memory_space<vmem>>, vector<128x256xbf16>
    %cst = arith.constant dense<0.000000e+00> : vector<128x256xf32>
    %2 = tpu.matmul %0, %1, %cst {dimension_numbers = #tpu.dot_dimension_numbers<[1], [0], [0], [1], [0, 0, 1, 1], [], []>} : vector<128x128xbf16>, vector<128x256xbf16>, vector<128x256xf32> -> vector<128x256xf32>
    %c0_3 = arith.constant 0 : index
    %c0_4 = arith.constant 0 : index
    %3 = vector.load %arg3[%c0_3, %c0_4] : memref<1x256xf32, #tpu.memory_space<vmem>>, vector<1x256xf32>
    %4 = vector.broadcast %3 : vector<1x256xf32> to vector<128x256xf32>
    %5 = arith.addf %2, %4 : vector<128x256xf32>
    %6 = vector.extract_strided_slice %5 {offsets = [0, 0], sizes = [128, 128], strides = [1, 1]} : vector<128x256xf32> to vector<128x128xf32>
    %7 = vector.extract_strided_slice %5 {offsets = [0, 128], sizes = [128, 128], strides = [1, 1]} : vector<128x256xf32> to vector<128x128xf32>
    %cst_5 = arith.constant 0.00999999977 : f32
    %8 = vector.broadcast %cst_5 : f32 to vector<128x128xf32>
    %9 = arith.mulf %8, %7 : vector<128x128xf32>
    %10 = arith.maximumf %7, %9 : vector<128x128xf32>
    %11 = arith.truncf %10 : vector<128x128xf32> to vector<128x128xbf16>
    %c0_6 = arith.constant 0 : index
    %c0_7 = arith.constant 0 : index
    %c0_8 = arith.constant 0 : index
    %12 = vector.load %arg4[%c0_6, %c0_7, %c0_8] : memref<2x128x128xbf16, #tpu.memory_space<vmem>>, vector<1x128x128xbf16>
    %13 = vector.shape_cast %12 : vector<1x128x128xbf16> to vector<128x128xbf16>
    %cst_9 = arith.constant dense<0.000000e+00> : vector<128x128xf32>
    %14 = tpu.matmul %11, %13, %cst_9 {dimension_numbers = #tpu.dot_dimension_numbers<[1], [0], [0], [1], [0, 0, 1, 1], [], []>} : vector<128x128xbf16>, vector<128x128xbf16>, vector<128x128xf32> -> vector<128x128xf32>
    %c0_10 = arith.constant 0 : index
    %c0_11 = arith.constant 0 : index
    %c0_12 = arith.constant 0 : index
    %15 = vector.load %arg5[%c0_10, %c0_11, %c0_12] : memref<2x1x128xf32, #tpu.memory_space<vmem>>, vector<1x1x128xf32>
    %16 = vector.shape_cast %15 : vector<1x1x128xf32> to vector<1x128xf32>
    %17 = vector.broadcast %16 : vector<1x128xf32> to vector<128x128xf32>
    %18 = arith.addf %14, %17 : vector<128x128xf32>
    %cst_13 = arith.constant 0.00999999977 : f32
    %19 = vector.broadcast %cst_13 : f32 to vector<128x128xf32>
    %20 = arith.mulf %19, %18 : vector<128x128xf32>
    %21 = arith.maximumf %18, %20 : vector<128x128xf32>
    %22 = arith.truncf %21 : vector<128x128xf32> to vector<128x128xbf16>
    %c1 = arith.constant 1 : index
    %c0_14 = arith.constant 0 : index
    %c0_15 = arith.constant 0 : index
    %23 = vector.load %arg4[%c1, %c0_14, %c0_15] : memref<2x128x128xbf16, #tpu.memory_space<vmem>>, vector<1x128x128xbf16>
    %24 = vector.shape_cast %23 : vector<1x128x128xbf16> to vector<128x128xbf16>
    %cst_16 = arith.constant dense<0.000000e+00> : vector<128x128xf32>
    %25 = tpu.matmul %22, %24, %cst_16 {dimension_numbers = #tpu.dot_dimension_numbers<[1], [0], [0], [1], [0, 0, 1, 1], [], []>} : vector<128x128xbf16>, vector<128x128xbf16>, vector<128x128xf32> -> vector<128x128xf32>
    %c1_17 = arith.constant 1 : index
    %c0_18 = arith.constant 0 : index
    %c0_19 = arith.constant 0 : index
    %26 = vector.load %arg5[%c1_17, %c0_18, %c0_19] : memref<2x1x128xf32, #tpu.memory_space<vmem>>, vector<1x1x128xf32>
    %27 = vector.shape_cast %26 : vector<1x1x128xf32> to vector<1x128xf32>
    %28 = vector.broadcast %27 : vector<1x128xf32> to vector<128x128xf32>
    %29 = arith.addf %25, %28 : vector<128x128xf32>
    %cst_20 = arith.constant 0.00999999977 : f32
    %30 = vector.broadcast %cst_20 : f32 to vector<128x128xf32>
    %31 = arith.mulf %30, %29 : vector<128x128xf32>
    %32 = arith.maximumf %29, %31 : vector<128x128xf32>
    %33 = arith.addf %6, %32 : vector<128x128xf32>
    %c0_21 = arith.constant 0 : index
    %c0_22 = arith.constant 0 : index
    %34 = vector.load %arg6[%c0_21, %c0_22] : memref<128x128xf32, #tpu.memory_space<vmem>>, vector<128x128xf32>
    tpu.vector_store %arg6[%c0_21, %c0_22], %33 {strides = array<i32>} : memref<128x128xf32, #tpu.memory_space<vmem>>, vector<128x128xf32>,
    return
  }
  func.func @transform_0(%arg0: i32) -> (i32, i32) {
    %c0_i32 = arith.constant 0 : i32
    %c0_i32_0 = arith.constant 0 : i32
    return %arg0, %c0_i32 : i32, i32
  }
  func.func @transform_1(%arg0: i32) -> (i32, i32) {
    %c0_i32 = arith.constant 0 : i32
    %c0_i32_0 = arith.constant 0 : i32
    %c0_i32_1 = arith.constant 0 : i32
    return %c0_i32, %c0_i32_0 : i32, i32
  }
  func.func @transform_2(%arg0: i32) -> (i32, i32) {
    %c0_i32 = arith.constant 0 : i32
    %c0_i32_0 = arith.constant 0 : i32
    %c0_i32_1 = arith.constant 0 : i32
    return %c0_i32, %c0_i32_0 : i32, i32
  }
  func.func @transform_3(%arg0: i32) -> (i32, i32, i32) {
    %c0_i32 = arith.constant 0 : i32
    %c0_i32_0 = arith.constant 0 : i32
    %c0_i32_1 = arith.constant 0 : i32
    %c0_i32_2 = arith.constant 0 : i32
    return %c0_i32, %c0_i32_0, %c0_i32_1 : i32, i32, i32
  }
  func.func @transform_4(%arg0: i32) -> (i32, i32, i32) {
    %c0_i32 = arith.constant 0 : i32
    %c0_i32_0 = arith.constant 0 : i32
    %c0_i32_1 = arith.constant 0 : i32
    %c0_i32_2 = arith.constant 0 : i32
    return %c0_i32, %c0_i32_0, %c0_i32_1 : i32, i32, i32
  }
  func.func @transform_5(%arg0: i32) -> (i32, i32) {
    %c0_i32 = arith.constant 0 : i32
    %c0_i32_0 = arith.constant 0 : i32
    return %arg0, %c0_i32 : i32, i32
  }
}

</mosaic_0001>

<llo_original>
// kernel: tpu_custom_call.1
$region0: #{tpu_custom_call.1}
  #allocation0 [shape = 'u32[]', space=smem, size = 0x4, offset = 0x4, fixed_abs, tag = 'smem constant byte address 0x4 - core index']
  #allocation1 [shape = 'u32[72,128]{1,0:T(1,128)}', space=vmem, size = 0x9000, scoped, tag = 'internal scratch']
  %s0 = inlined_call_operand.hbm [shape: bf16[256,128], index: 0, kind: input, shape index: {}]
  %s1 = inlined_call_operand.hbm [shape: bf16[128,256], index: 1, kind: input, shape index: {}]
  %s2 = inlined_call_operand.hbm [shape: f32[1,256], index: 2, kind: input, shape index: {}]
  %s3 = inlined_call_operand.hbm [shape: bf16[2,128,128], index: 3, kind: input, shape index: {}]
  %s4 = inlined_call_operand.vmem [shape: f32[2,1,128], index: 4, kind: input, shape index: {}]
  %s5 = inlined_call_operand.hbm [shape: f32[256,128], index: 5, kind: output, shape index: {}]
  %s6 = sld [smem:[#allocation0]]
  $region69: #{tpu_custom_call.1} parent=0
    _
  %s8 = ssub.s32 1, %s6
  %s9 = scalar_select 0, %s8, %s6
  $region1: #{tpu_custom_call.1} parent=0
    #allocation2 [shape = 'u8[65536]{0}', space=vmem, size = 0x10000, scoped, tag = 'input window, operand 0']
    #allocation3 [shape = 's32[2]{0}', space=sflag, size = 0x8, scoped, tag = 'scoped memory for tpu_custom_call.1']
    #allocation4 [shape = 's32[2]{0}', space=sflag, size = 0x8, scoped, tag = 'scoped memory for tpu_custom_call.1']
    #allocation5 [shape = 'u8[65536]{0}', space=vmem, size = 0x10000, scoped, tag = 'input window, operand 1, single buffered']
    #allocation6 [shape = 's32[1]{0}', space=sflag, size = 0x4, scoped, tag = 'scoped memory for tpu_custom_call.1']
    #allocation7 [shape = 'u8[1024]{0}', space=vmem, size = 0x400, scoped, tag = 'input window, operand 2, single buffered']
    #allocation8 [shape = 'u8[65536]{0}', space=vmem, size = 0x10000, scoped, tag = 'input window, operand 3, single buffered']
    #allocation9 [shape = 's32[1]{0}', space=sflag, size = 0x4, scoped, tag = 'scoped memory for tpu_custom_call.1']
    #allocation10 [shape = 'u8[131072]{0}', space=vmem, size = 0x20000, scoped, tag = 'output window, operand 0']
    %10 = vsyncpa [#allocation3], 0
    %s11 = scalar_lea.sflag [#allocation3], 1
    %12 = vsyncpa %s11, 0
    %13 = vsyncpa [#allocation6], 0
    %14 = vsyncpa [#allocation9], 0
    %15 = vsyncpa [#allocation4], 0
    %s16 = scalar_lea.sflag [#allocation4], 1
    %17 = vsyncpa %s16, 0
    loop: start=0, step=1, limit=4
    $region2: #{tpu_custom_call.1} parent=1 // loop_pre_header
      _
    $region3: #{tpu_custom_call.1} parent=1 // loop_header
      %s19 = sphi 0, %s23
      %p20 = scmp.ge.s32.totalorder %s19, 4
      %s29 = sphi 0, %s31
      %s32 = sphi 0, %s29
      %s33 = sphi 0, %s32
      %s49 = sphi 0, %s33
      %s53 = sphi 0, %s53
      %s55 = sphi 0, %s53
      %s56 = sphi 0, %s55
      %s70 = sphi 0, %s56
      %s74 = sphi 0, %s74
      %s76 = sphi 0, %s74
      %s77 = sphi 0, %s76
      %s91 = sphi 0, %s77
      %s95 = sphi 0, %s95
      %s97 = sphi 0, %s95
      %s98 = sphi 0, %s97
      %s112 = sphi 0, %s98
      %s116 = sphi 0, %s116
      %s118 = sphi 0, %s116
      %s119 = sphi 0, %s118
      %s133 = sphi 0, %s119
      %s139 = sphi 0, %s141
      %s142 = sphi 0, %s139
      %s143 = sphi 0, %s142
      %s159 = sphi 0, %s143
    $region4: #{tpu_custom_call.1} parent=1 // loop_header_branch
      %22 = sbr.rel (%p20) target = $region8
    $region5: #{tpu_custom_call.1} parent=1 // loop_body
      %s24 = ssub.s32 %s19, 1
      %s25 = ssub.s32 %s19, 2
      %s26 = sadd.s32 %s19, 1
      %s27 = ssub.s32 %s19, %s26
      %p28 = scmp.eq.s32.totalorder %s27, 0
      %s30 = sadd.s32 %s29, 1
      %s31 = scalar_select %p28, %s29, %s30
      %p34 = pneg %p28
      %p35 = scmp.eq.s32.totalorder %s19, 1
      %p36 = por %p34, %p35
      %p37 = scmp.ne.s32.totalorder %s29, %s32
      %p38 = scmp.eq.s32.totalorder %s19, 0
      %p39 = por %p37, %p38
      %p40 = scmp.ne.s32.totalorder %s29, %s32
      %p41 = scmp.eq.s32.totalorder %s24, 1
      %p42 = por %p40, %p41
      %p43 = scmp.ne.s32.totalorder %s32, %s33
      %p44 = scmp.eq.s32.totalorder %s24, 0
      %p45 = por %p43, %p44
      %p46 = scmp.ne.s32.totalorder %s32, %s33
      %p47 = scmp.eq.s32.totalorder %s25, 1
      %p48 = por %p46, %p47
      %p50 = scmp.ne.s32.totalorder %s33, %s49
      %p51 = scmp.eq.s32.totalorder %s25, 0
      %p52 = por %p50, %p51
      %s54 = sadd.s32 %s53, 1
      %p57 = scmp.eq.s32.totalorder %s19, 1
      %p58 = scmp.ne.s32.totalorder %s53, %s55
      %p59 = scmp.eq.s32.totalorder %s19, 0
      %p60 = por %p58, %p59
      %p61 = scmp.ne.s32.totalorder %s53, %s55
      %p62 = scmp.eq.s32.totalorder %s24, 1
      %p63 = por %p61, %p62
      %p64 = scmp.ne.s32.totalorder %s55, %s56
      %p65 = scmp.eq.s32.totalorder %s24, 0
      %p66 = por %p64, %p65
      %p67 = scmp.ne.s32.totalorder %s55, %s56
      %p68 = scmp.eq.s32.totalorder %s25, 1
      %p69 = por %p67, %p68
      %p71 = scmp.ne.s32.totalorder %s56, %s70
      %p72 = scmp.eq.s32.totalorder %s25, 0
      %p73 = por %p71, %p72
      %s75 = sadd.s32 %s74, 1
      %p78 = scmp.eq.s32.totalorder %s19, 1
      %p79 = scmp.ne.s32.totalorder %s74, %s76
      %p80 = scmp.eq.s32.totalorder %s19, 0
      %p81 = por %p79, %p80
      %p82 = scmp.ne.s32.totalorder %s74, %s76
      %p83 = scmp.eq.s32.totalorder %s24, 1
      %p84 = por %p82, %p83
      %p85 = scmp.ne.s32.totalorder %s76, %s77
      %p86 = scmp.eq.s32.totalorder %s24, 0
      %p87 = por %p85, %p86
      %p88 = scmp.ne.s32.totalorder %s76, %s77
      %p89 = scmp.eq.s32.totalorder %s25, 1
      %p90 = por %p88, %p89
      %p92 = scmp.ne.s32.totalorder %s77, %s91
      %p93 = scmp.eq.s32.totalorder %s25, 0
      %p94 = por %p92, %p93
      %s96 = sadd.s32 %s95, 1
      %p99 = scmp.eq.s32.totalorder %s19, 1
      %p100 = scmp.ne.s32.totalorder %s95, %s97
      %p101 = scmp.eq.s32.totalorder %s19, 0
      %p102 = por %p100, %p101
      %p103 = scmp.ne.s32.totalorder %s95, %s97
      %p104 = scmp.eq.s32.totalorder %s24, 1
      %p105 = por %p103, %p104
      %p106 = scmp.ne.s32.totalorder %s97, %s98
      %p107 = scmp.eq.s32.totalorder %s24, 0
      %p108 = por %p106, %p107
      %p109 = scmp.ne.s32.totalorder %s97, %s98
      %p110 = scmp.eq.s32.totalorder %s25, 1
      %p111 = por %p109, %p110
      %p113 = scmp.ne.s32.totalorder %s98, %s112
      %p114 = scmp.eq.s32.totalorder %s25, 0
      %p115 = por %p113, %p114
      %s117 = sadd.s32 %s116, 1
      %p120 = scmp.eq.s32.totalorder %s19, 1
      %p121 = scmp.ne.s32.totalorder %s116, %s118
      %p122 = scmp.eq.s32.totalorder %s19, 0
      %p123 = por %p121, %p122
      %p124 = scmp.ne.s32.totalorder %s116, %s118
      %p125 = scmp.eq.s32.totalorder %s24, 1
      %p126 = por %p124, %p125
      %p127 = scmp.ne.s32.totalorder %s118, %s119
      %p128 = scmp.eq.s32.totalorder %s24, 0
      %p129 = por %p127, %p128
      %p130 = scmp.ne.s32.totalorder %s118, %s119
      %p131 = scmp.eq.s32.totalorder %s25, 1
      %p132 = por %p130, %p131
      %p134 = scmp.ne.s32.totalorder %s119, %s133
      %p135 = scmp.eq.s32.totalorder %s25, 0
      %p136 = por %p134, %p135
      %s137 = ssub.s32 %s19, %s26
      %p138 = scmp.eq.s32.totalorder %s137, 0
      %s140 = sadd.s32 %s139, 1
      %s141 = scalar_select %p138, %s139, %s140
      %p144 = pneg %p138
      %p145 = scmp.eq.s32.totalorder %s19, 1
      %p146 = por %p144, %p145
      %p147 = scmp.ne.s32.totalorder %s139, %s142
      %p148 = scmp.eq.s32.totalorder %s19, 0
      %p149 = por %p147, %p148
      %p150 = scmp.ne.s32.totalorder %s139, %s142
      %p151 = scmp.eq.s32.totalorder %s24, 1
      %p152 = por %p150, %p151
      %p153 = scmp.ne.s32.totalorder %s142, %s143
      %p154 = scmp.eq.s32.totalorder %s24, 0
      %p155 = por %p153, %p154
      %p156 = scmp.ne.s32.totalorder %s142, %s143
      %p157 = scmp.eq.s32.totalorder %s25, 1
      %p158 = por %p156, %p157
      %p160 = scmp.ne.s32.totalorder %s143, %s159
      %p161 = scmp.eq.s32.totalorder %s25, 0
      %p162 = por %p160, %p161
      %p163 = scmp.le.s32.totalorder 1, %s19
      %p164 = scmp.lt.s32.totalorder %s19, 3
      %p165 = pnand %p163, %p164
      %p166 = pneg %p165
      // Predicated region
      $region9: #{tpu_custom_call.1} parent=5 // pred_check
        _
      $region10: #{tpu_custom_call.1} parent=5 // pred_check_branch
        %168 = sbr.rel (%p165) target = $region12
      $region11: #{tpu_custom_call.1} parent=5 // pred_region
        %s169 = ssub.s32 %s19, 1
        // Predicated region
        $region13: #{tpu_custom_call.1} parent=11 // pred_check
          %p170 = pneg %p66
        $region14: #{tpu_custom_call.1} parent=11 // pred_check_branch
          %172 = sbr.rel (%p170) target = $region16
        $region15: #{tpu_custom_call.1} parent=11 // pred_region
          %174 = vsyncadd [#allocation6], 0
          %s175 = sshll.u32 %s1, 4
          %s176 = int_to_ptr.hbm [resolvable:$true] %s175
          %s177 = sshll.u32 [#allocation5], 4
          %s178 = int_to_ptr.vmem [resolvable:$true] %s177
          %183 = dma.hbm_to_vmem [thread:$0]  %s176, 2048, %s178, [#allocation6], 128, 128, 8
        $region16: #{tpu_custom_call.1} parent=11 // pred_fallthru
          _
        // Predicated region
        $region17: #{tpu_custom_call.1} parent=11 // pred_check
          %p184 = pneg %p87
        $region18: #{tpu_custom_call.1} parent=11 // pred_check_branch
          %186 = sbr.rel (%p184) target = $region20
        $region19: #{tpu_custom_call.1} parent=11 // pred_region
          %188 = vsyncadd [#allocation6], 0
          %s190 = sshll.u32 %s2, 4
          %s191 = int_to_ptr.hbm [resolvable:$true] %s190
          %s192 = sshll.u32 [#allocation7], 4
          %s193 = int_to_ptr.vmem [resolvable:$true] %s192
          %195 = dma.hbm_to_vmem [thread:$0]  %s191, 32, %s193, [#allocation6]
        $region20: #{tpu_custom_call.1} parent=11 // pred_fallthru
          _
        // Predicated region
        $region21: #{tpu_custom_call.1} parent=11 // pred_check
          %p196 = pneg %p108
        $region22: #{tpu_custom_call.1} parent=11 // pred_check_branch
          %198 = sbr.rel (%p196) target = $region24
        $region23: #{tpu_custom_call.1} parent=11 // pred_region
          %200 = vsyncadd [#allocation9], 0
          %s201 = sshll.u32 %s3, 4
          %s202 = int_to_ptr.hbm [resolvable:$true] %s201
          %s203 = sshll.u32 [#allocation8], 4
          %s204 = int_to_ptr.vmem [resolvable:$true] %s203
          %209 = dma.hbm_to_vmem [thread:$0]  %s202, 2048, %s204, [#allocation9], 64, 64, 4
        $region24: #{tpu_custom_call.1} parent=11 // pred_fallthru
          _
        // Predicated region
        $region25: #{tpu_custom_call.1} parent=11 // pred_check
          %p210 = pneg %p129
        $region26: #{tpu_custom_call.1} parent=11 // pred_check_branch
          %212 = sbr.rel (%p210) target = $region28
        $region27: #{tpu_custom_call.1} parent=11 // pred_region
          _
        $region28: #{tpu_custom_call.1} parent=11 // pred_fallthru
          _
      $region12: #{tpu_custom_call.1} parent=5 // pred_fallthru
        _
      %p213 = scmp.lt.s32.totalorder %s19, 2
      // Predicated region
      $region29: #{tpu_custom_call.1} parent=5 // pred_check
        %p214 = pneg %p213
      $region30: #{tpu_custom_call.1} parent=5 // pred_check_branch
        %216 = sbr.rel (%p214) target = $region32
      $region31: #{tpu_custom_call.1} parent=5 // pred_region
        // Predicated region
        $region33: #{tpu_custom_call.1} parent=31 // pred_check
          %p217 = pneg %p39
        $region34: #{tpu_custom_call.1} parent=31 // pred_check_branch
          %219 = sbr.rel (%p217) target = $region36
        $region35: #{tpu_custom_call.1} parent=31 // pred_region
          %s220 = sand.u32 %s29, 1
          %s221 = scalar_lea.sflag [#allocation3], %s220
          %s222 = sand.u32 %s29, 1
          %s223 = smul.addr %s222, 64
          %s224 = scalar_lea.vmem [#allocation2], %s223
          %s225 = smul.u32 16, %s19
          %227 = vsyncadd %s221, 0
          %s228 = smul.addr %s225, 4
          %s229 = scalar_lea.hbm %s0, %s228
          %s230 = sshll.u32 %s229, 4
          %s231 = int_to_ptr.hbm [resolvable:$true] %s230
          %s232 = sshll.u32 %s224, 4
          %s233 = int_to_ptr.vmem [resolvable:$true] %s232
          %238 = dma.hbm_to_vmem [thread:$0]  %s231, 1024, %s233, %s221, 64, 64, 4
        $region36: #{tpu_custom_call.1} parent=31 // pred_fallthru
          _
      $region32: #{tpu_custom_call.1} parent=5 // pred_fallthru
        _
      %p239 = scmp.le.s32.totalorder 1, %s19
      %p240 = scmp.lt.s32.totalorder %s19, 3
      %p241 = pnand %p239, %p240
      %p242 = pneg %p241
      // Predicated region
      $region37: #{tpu_custom_call.1} parent=5 // pred_check
        _
      $region38: #{tpu_custom_call.1} parent=5 // pred_check_branch
        %244 = sbr.rel (%p241) target = $region40
      $region39: #{tpu_custom_call.1} parent=5 // pred_region
        %s245 = ssub.s32 %s19, 1
        %s246 = sand.u32 %s32, 1
        %s247 = scalar_lea.sflag [#allocation3], %s246
        %s248 = sand.u32 %s32, 1
        %s249 = smul.addr %s248, 64
        %s250 = scalar_lea.vmem [#allocation2], %s249
        // Predicated region
        $region41: #{tpu_custom_call.1} parent=39 // pred_check
          %p251 = pneg %p45
        $region42: #{tpu_custom_call.1} parent=39 // pred_check_branch
          %253 = sbr.rel (%p251) target = $region44
        $region43: #{tpu_custom_call.1} parent=39 // pred_region
          %255 = dma.done %s247, 1024
        $region44: #{tpu_custom_call.1} parent=39 // pred_fallthru
          _
        // Predicated region
        $region45: #{tpu_custom_call.1} parent=39 // pred_check
          %p256 = pneg %p66
        $region46: #{tpu_custom_call.1} parent=39 // pred_check_branch
          %258 = sbr.rel (%p256) target = $region48
        $region47: #{tpu_custom_call.1} parent=39 // pred_region
          %260 = dma.done [#allocation6], 2048
        $region48: #{tpu_custom_call.1} parent=39 // pred_fallthru
          _
        // Predicated region
        $region49: #{tpu_custom_call.1} parent=39 // pred_check
          %p261 = pneg %p87
        $region50: #{tpu_custom_call.1} parent=39 // pred_check_branch
          %263 = sbr.rel (%p261) target = $region52
        $region51: #{tpu_custom_call.1} parent=39 // pred_region
          %265 = dma.done [#allocation6], 32
        $region52: #{tpu_custom_call.1} parent=39 // pred_fallthru
          _
        // Predicated region
        $region53: #{tpu_custom_call.1} parent=39 // pred_check
          %p266 = pneg %p108
        $region54: #{tpu_custom_call.1} parent=39 // pred_check_branch
          %268 = sbr.rel (%p266) target = $region56
        $region55: #{tpu_custom_call.1} parent=39 // pred_region
          %270 = dma.done [#allocation9], 2048
        $region56: #{tpu_custom_call.1} parent=39 // pred_fallthru
          _
        %s271 = sand.u32 %s32, 1
        %s272 = scalar_lea.sflag [#allocation3], %s271
        %s273 = sand.u32 %s32, 1
        %s274 = smul.addr %s273, 64
        %s275 = scalar_lea.vmem [#allocation2], %s274
        %p276 = pneg %p45
        %p277 = pneg %p42
        %p278 = pneg %p66
        %p279 = pneg %p63
        %p280 = pneg %p87
        %p281 = pneg %p84
        %p282 = pneg %p108
        %p283 = pneg %p105
        %p284 = pneg %p129
        %p285 = pneg %p126
        %p286 = pneg %p155
        %p287 = pneg %p152
        %s288 = sand.u32 %s142, 1
        %s289 = scalar_lea.sflag [#allocation4], %s288
        %s290 = sand.u32 %s142, 1
        %s291 = smul.addr %s290, 128
        %s292 = scalar_lea.vmem [#allocation10], %s291
        %s293 = smul.u32 16, %s24
        %s294 = smul.u32 16, %s24
        %v295 = vld [vmem:[%s250] sm:$0xf]
        %v296 = vld [vmem:[%s250 + $0x4] sm:$0xf]
        %v297 = vld [vmem:[%s250 + $0x8] sm:$0xf]
        %v298 = vld [vmem:[%s250 + $0xc] sm:$0xf]
        %v299 = vld [vmem:[%s250 + $0x10] sm:$0xf]
        %v300 = vld [vmem:[%s250 + $0x14] sm:$0xf]
        %v301 = vld [vmem:[%s250 + $0x18] sm:$0xf]
        %v302 = vld [vmem:[%s250 + $0x1c] sm:$0xf]
        %v303 = vld [vmem:[%s250 + $0x20] sm:$0xf]
        %v304 = vld [vmem:[%s250 + $0x24] sm:$0xf]
        %v305 = vld [vmem:[%s250 + $0x28] sm:$0xf]
        %v306 = vld [vmem:[%s250 + $0x2c] sm:$0xf]
        %v307 = vld [vmem:[%s250 + $0x30] sm:$0xf]
        %v308 = vld [vmem:[%s250 + $0x34] sm:$0xf]
        %v309 = vld [vmem:[%s250 + $0x38] sm:$0xf]
        %v310 = vld [vmem:[%s250 + $0x3c] sm:$0xf]
        %v311 = vld [vmem:[#allocation5] sm:$0xff]
        %v312 = vld [vmem:[#allocation5 + $0x8] sm:$0xff]
        %v313 = vld [vmem:[#allocation5 + $0x10] sm:$0xff]
        %v314 = vld [vmem:[#allocation5 + $0x18] sm:$0xff]
        %v315 = vld [vmem:[#allocation5 + $0x20] sm:$0xff]
        %v316 = vld [vmem:[#allocation5 + $0x28] sm:$0xff]
        %v317 = vld [vmem:[#allocation5 + $0x30] sm:$0xff]
        %v318 = vld [vmem:[#allocation5 + $0x38] sm:$0xff]
        %v319 = vld [vmem:[#allocation5 + $0x40] sm:$0xff]
        %v320 = vld [vmem:[#allocation5 + $0x48] sm:$0xff]
        %v321 = vld [vmem:[#allocation5 + $0x50] sm:$0xff]
        %v322 = vld [vmem:[#allocation5 + $0x58] sm:$0xff]
        %v323 = vld [vmem:[#allocation5 + $0x60] sm:$0xff]
        %v324 = vld [vmem:[#allocation5 + $0x68] sm:$0xff]
        %v325 = vld [vmem:[#allocation5 + $0x70] sm:$0xff]
        %v326 = vld [vmem:[#allocation5 + $0x78] sm:$0xff]
        %v327 = vld [vmem:[#allocation7] sm:$0x3]
        %v329 = vperm.slane %v327, 0
        %v330 = vperm.slane %v327, 1
        %v349 = vunpack.c.l.b16 %v295
        %v350 = vunpack.c.l.b16 %v296
        %v351 = vunpack.c.l.b16 %v297
        %v352 = vunpack.c.l.b16 %v298
        %v353 = vunpack.c.l.b16 %v299
        %v354 = vunpack.c.l.b16 %v300
        %v355 = vunpack.c.l.b16 %v301
        %v356 = vunpack.c.l.b16 %v302
        %v357 = vunpack.c.l.b16 %v303
        %v358 = vunpack.c.l.b16 %v304
        %v359 = vunpack.c.l.b16 %v305
        %v360 = vunpack.c.l.b16 %v306
        %v361 = vunpack.c.l.b16 %v307
        %v362 = vunpack.c.l.b16 %v308
        %v363 = vunpack.c.l.b16 %v309
        %v364 = vunpack.c.l.b16 %v310
        %v365 = vpack.c.b16 %v350, %v349
        %v366 = vpack.c.b16 %v352, %v351
        %v367 = vpack.c.b16 %v354, %v353
        %v368 = vpack.c.b16 %v356, %v355
        %v369 = vpack.c.b16 %v358, %v357
        %v370 = vpack.c.b16 %v360, %v359
        %v371 = vpack.c.b16 %v362, %v361
        %v372 = vpack.c.b16 %v364, %v363
        %v397 = vunpack.c.l.b16 %v311
        %v398 = vunpack.c.h.b16 %v311
        %v399 = vunpack.c.l.b16 %v312
        %v400 = vunpack.c.h.b16 %v312
        %v401 = vunpack.c.l.b16 %v313
        %v402 = vunpack.c.h.b16 %v313
        %v403 = vunpack.c.l.b16 %v314
        %v404 = vunpack.c.h.b16 %v314
        %v405 = vunpack.c.l.b16 %v315
        %v406 = vunpack.c.h.b16 %v315
        %v407 = vunpack.c.l.b16 %v316
        %v408 = vunpack.c.h.b16 %v316
        %v409 = vunpack.c.l.b16 %v317
        %v410 = vunpack.c.h.b16 %v317
        %v411 = vunpack.c.l.b16 %v318
        %v412 = vunpack.c.h.b16 %v318
        %v413 = vunpack.c.l.b16 %v319
        %v414 = vunpack.c.h.b16 %v319
        %v415 = vunpack.c.l.b16 %v320
        %v416 = vunpack.c.h.b16 %v320
        %v417 = vunpack.c.l.b16 %v321
        %v418 = vunpack.c.h.b16 %v321
        %v419 = vunpack.c.l.b16 %v322
        %v420 = vunpack.c.h.b16 %v322
        %v421 = vunpack.c.l.b16 %v323
        %v422 = vunpack.c.h.b16 %v323
        %v423 = vunpack.c.l.b16 %v324
        %v424 = vunpack.c.h.b16 %v324
        %v425 = vunpack.c.l.b16 %v325
        %v426 = vunpack.c.h.b16 %v325
        %v427 = vunpack.c.l.b16 %v326
        %v428 = vunpack.c.h.b16 %v326
        %v429 = vpack.c.b16 %v399, %v397
        %v430 = vpack.c.b16 %v400, %v398
        %v431 = vpack.c.b16 %v403, %v401
        %v432 = vpack.c.b16 %v404, %v402
        %v433 = vpack.c.b16 %v407, %v405
        %v434 = vpack.c.b16 %v408, %v406
        %v435 = vpack.c.b16 %v411, %v409
        %v436 = vpack.c.b16 %v412, %v410
        %v437 = vpack.c.b16 %v415, %v413
        %v438 = vpack.c.b16 %v416, %v414
        %v439 = vpack.c.b16 %v419, %v417
        %v440 = vpack.c.b16 %v420, %v418
        %v441 = vpack.c.b16 %v423, %v421
        %v442 = vpack.c.b16 %v424, %v422
        %v443 = vpack.c.b16 %v427, %v425
        %v444 = vpack.c.b16 %v428, %v426
        %461 = vmatpush.bf16.msra.mxu0 %v443
        %462 = vmatpush.bf16.msra.mxu0 %v441
        %463 = vmatpush.bf16.msra.mxu0 %v439
        %464 = vmatpush.bf16.msra.mxu0 %v437
        %465 = vmatpush.bf16.msra.mxu0 %v435
        %466 = vmatpush.bf16.msra.mxu0 %v433
        %467 = vmatpush.bf16.msra.mxu0 %v431
        %468 = vmatpush.bf16.msra.mxu0 %v429
        %469 = vmatmul.bf16.gmra.mxu0 %v365
        %v470 = vpop.f32.mrf.mxu0
        %v471 = vadd.f32 %v329, %v470
        %v472 = vpop.f32.mrf.mxu0
        %v473 = vadd.f32 %v329, %v472
        %474 = vmatmul.bf16.gmra.mxu0 %v366
        %v475 = vpop.f32.mrf.mxu0
        %v476 = vadd.f32 %v329, %v475
        %v477 = vpop.f32.mrf.mxu0
        %v478 = vadd.f32 %v329, %v477
        %479 = vmatmul.bf16.gmra.mxu0 %v367
        %v480 = vpop.f32.mrf.mxu0
        %v481 = vadd.f32 %v329, %v480
        %v482 = vpop.f32.mrf.mxu0
        %v483 = vadd.f32 %v329, %v482
        %484 = vmatmul.bf16.gmra.mxu0 %v368
        %v485 = vpop.f32.mrf.mxu0
        %v486 = vadd.f32 %v329, %v485
        %v487 = vpop.f32.mrf.mxu0
        %v488 = vadd.f32 %v329, %v487
        %489 = vmatmul.bf16.gmra.mxu0 %v369
        %v490 = vpop.f32.mrf.mxu0
        %v491 = vadd.f32 %v329, %v490
        %v492 = vpop.f32.mrf.mxu0
        %v493 = vadd.f32 %v329, %v492
        %494 = vmatmul.bf16.gmra.mxu0 %v370
        %v495 = vpop.f32.mrf.mxu0
        %v496 = vadd.f32 %v329, %v495
        %v497 = vpop.f32.mrf.mxu0
        %v498 = vadd.f32 %v329, %v497
        %499 = vmatmul.bf16.gmra.mxu0 %v371
        %v500 = vpop.f32.mrf.mxu0
        %v501 = vadd.f32 %v329, %v500
        %v502 = vpop.f32.mrf.mxu0
        %v503 = vadd.f32 %v329, %v502
        %504 = vmatmul.bf16.gmra.mxu0 %v372
        %v505 = vpop.f32.mrf.mxu0
        %v506 = vadd.f32 %v329, %v505
        %v507 = vpop.f32.mrf.mxu0
        %v508 = vadd.f32 %v329, %v507
        %509 = vdwg.mxu0
        %510 = vmatpush.bf16.msra.mxu0 %v444
        %511 = vmatpush.bf16.msra.mxu0 %v442
        %512 = vmatpush.bf16.msra.mxu0 %v440
        %513 = vmatpush.bf16.msra.mxu0 %v438
        %514 = vmatpush.bf16.msra.mxu0 %v436
        %515 = vmatpush.bf16.msra.mxu0 %v434
        %516 = vmatpush.bf16.msra.mxu0 %v432
        %517 = vmatpush.bf16.msra.mxu0 %v430
        %518 = vmatmul.bf16.gmra.mxu0 %v365
        %v519 = vpop.f32.mrf.mxu0
        %v520 = vadd.f32 %v330, %v519
        %v521 = vpop.f32.mrf.mxu0
        %v522 = vadd.f32 %v330, %v521
        %523 = vmatmul.bf16.gmra.mxu0 %v366
        %v524 = vpop.f32.mrf.mxu0
        %v525 = vadd.f32 %v330, %v524
        %v526 = vpop.f32.mrf.mxu0
        %v527 = vadd.f32 %v330, %v526
        %528 = vmatmul.bf16.gmra.mxu0 %v367
        %v529 = vpop.f32.mrf.mxu0
        %v530 = vadd.f32 %v330, %v529
        %v531 = vpop.f32.mrf.mxu0
        %v532 = vadd.f32 %v330, %v531
        %533 = vmatmul.bf16.gmra.mxu0 %v368
        %v534 = vpop.f32.mrf.mxu0
        %v535 = vadd.f32 %v330, %v534
        %v536 = vpop.f32.mrf.mxu0
        %v537 = vadd.f32 %v330, %v536
        %538 = vmatmul.bf16.gmra.mxu0 %v369
        %v539 = vpop.f32.mrf.mxu0
        %v540 = vadd.f32 %v330, %v539
        %v541 = vpop.f32.mrf.mxu0
        %v542 = vadd.f32 %v330, %v541
        %543 = vmatmul.bf16.gmra.mxu0 %v370
        %v544 = vpop.f32.mrf.mxu0
        %v545 = vadd.f32 %v330, %v544
        %v546 = vpop.f32.mrf.mxu0
        %v547 = vadd.f32 %v330, %v546
        %548 = vmatmul.bf16.gmra.mxu0 %v371
        %v549 = vpop.f32.mrf.mxu0
        %v550 = vadd.f32 %v330, %v549
        %v551 = vpop.f32.mrf.mxu0
        %v552 = vadd.f32 %v330, %v551
        %553 = vmatmul.bf16.gmra.mxu0 %v372
        %v554 = vpop.f32.mrf.mxu0
        %v555 = vadd.f32 %v330, %v554
        %v556 = vpop.f32.mrf.mxu0
        %v557 = vadd.f32 %v330, %v556
        %558 = vdwg.mxu0
        %v559 = vmul.f32 %v520, 0.01
        %v560 = vmul.f32 %v522, 0.01
        %v561 = vmul.f32 %v525, 0.01
        %v562 = vmul.f32 %v527, 0.01
        %v563 = vmul.f32 %v530, 0.01
        %v564 = vmul.f32 %v532, 0.01
        %v565 = vmul.f32 %v535, 0.01
        %v566 = vmul.f32 %v537, 0.01
        %v567 = vmul.f32 %v540, 0.01
        %v568 = vmul.f32 %v542, 0.01
        %v569 = vmul.f32 %v545, 0.01
        %v570 = vmul.f32 %v547, 0.01
        %v571 = vmul.f32 %v550, 0.01
        %v572 = vmul.f32 %v552, 0.01
        %v573 = vmul.f32 %v555, 0.01
        %v574 = vmul.f32 %v557, 0.01
        %v575 = vmax.f32 %v520, %v559
        %v576 = vmax.f32 %v522, %v560
        %v577 = vmax.f32 %v525, %v561
        %v578 = vmax.f32 %v527, %v562
        %v579 = vmax.f32 %v530, %v563
        %v580 = vmax.f32 %v532, %v564
        %v581 = vmax.f32 %v535, %v565
        %v582 = vmax.f32 %v537, %v566
        %v583 = vmax.f32 %v540, %v567
        %v584 = vmax.f32 %v542, %v568
        %v585 = vmax.f32 %v545, %v569
        %v586 = vmax.f32 %v547, %v570
        %v587 = vmax.f32 %v550, %v571
        %v588 = vmax.f32 %v552, %v572
        %v589 = vmax.f32 %v555, %v573
        %v590 = vmax.f32 %v557, %v574
        %v591 = vpack.c.bf16 %v576, %v575
        %v592 = vpack.c.bf16 %v578, %v577
        %v593 = vpack.c.bf16 %v580, %v579
        %v594 = vpack.c.bf16 %v582, %v581
        %v595 = vpack.c.bf16 %v584, %v583
        %v596 = vpack.c.bf16 %v586, %v585
        %v597 = vpack.c.bf16 %v588, %v587
        %v598 = vpack.c.bf16 %v590, %v589
        %v599 = vld [vmem:[#allocation8] sm:$0xf]
        %v600 = vld [vmem:[#allocation8 + $0x4] sm:$0xf]
        %v601 = vld [vmem:[#allocation8 + $0x8] sm:$0xf]
        %v602 = vld [vmem:[#allocation8 + $0xc] sm:$0xf]
        %v603 = vld [vmem:[#allocation8 + $0x10] sm:$0xf]
        %v604 = vld [vmem:[#allocation8 + $0x14] sm:$0xf]
        %v605 = vld [vmem:[#allocation8 + $0x18] sm:$0xf]
        %v606 = vld [vmem:[#allocation8 + $0x1c] sm:$0xf]
        %v607 = vld [vmem:[#allocation8 + $0x20] sm:$0xf]
        %v608 = vld [vmem:[#allocation8 + $0x24] sm:$0xf]
        %v609 = vld [vmem:[#allocation8 + $0x28] sm:$0xf]
        %v610 = vld [vmem:[#allocation8 + $0x2c] sm:$0xf]
        %v611 = vld [vmem:[#allocation8 + $0x30] sm:$0xf]
        %v612 = vld [vmem:[#allocation8 + $0x34] sm:$0xf]
        %v613 = vld [vmem:[#allocation8 + $0x38] sm:$0xf]
        %v614 = vld [vmem:[#allocation8 + $0x3c] sm:$0xf]
        %v615 = vld [vmem:[%s4] sm:$0x1]
        %v617 = vperm.slane %v615, 0
        %v635 = vunpack.c.l.b16 %v599
        %v636 = vunpack.c.l.b16 %v600
        %v637 = vunpack.c.l.b16 %v601
        %v638 = vunpack.c.l.b16 %v602
        %v639 = vunpack.c.l.b16 %v603
        %v640 = vunpack.c.l.b16 %v604
        %v641 = vunpack.c.l.b16 %v605
        %v642 = vunpack.c.l.b16 %v606
        %v643 = vunpack.c.l.b16 %v607
        %v644 = vunpack.c.l.b16 %v608
        %v645 = vunpack.c.l.b16 %v609
        %v646 = vunpack.c.l.b16 %v610
        %v647 = vunpack.c.l.b16 %v611
        %v648 = vunpack.c.l.b16 %v612
        %v649 = vunpack.c.l.b16 %v613
        %v650 = vunpack.c.l.b16 %v614
        %v651 = vpack.c.b16 %v636, %v635
        %v652 = vpack.c.b16 %v638, %v637
        %v653 = vpack.c.b16 %v640, %v639
        %v654 = vpack.c.b16 %v642, %v641
        %v655 = vpack.c.b16 %v644, %v643
        %v656 = vpack.c.b16 %v646, %v645
        %v657 = vpack.c.b16 %v648, %v647
        %v658 = vpack.c.b16 %v650, %v649
        %667 = vmatpush.bf16.msra.mxu0 %v658
        %668 = vmatpush.bf16.msra.mxu0 %v657
        %669 = vmatpush.bf16.msra.mxu0 %v656
        %670 = vmatpush.bf16.msra.mxu0 %v655
        %671 = vmatpush.bf16.msra.mxu0 %v654
        %672 = vmatpush.bf16.msra.mxu0 %v653
        %673 = vmatpush.bf16.msra.mxu0 %v652
        %674 = vmatpush.bf16.msra.mxu0 %v651
        %675 = vmatmul.bf16.gmra.mxu0 %v591
        %v676 = vpop.f32.mrf.mxu0
        %v677 = vadd.f32 %v617, %v676
        %v678 = vpop.f32.mrf.mxu0
        %v679 = vadd.f32 %v617, %v678
        %680 = vmatmul.bf16.gmra.mxu0 %v592
        %v681 = vpop.f32.mrf.mxu0
        %v682 = vadd.f32 %v617, %v681
        %v683 = vpop.f32.mrf.mxu0
        %v684 = vadd.f32 %v617, %v683
        %685 = vmatmul.bf16.gmra.mxu0 %v593
        %v686 = vpop.f32.mrf.mxu0
        %v687 = vadd.f32 %v617, %v686
        %v688 = vpop.f32.mrf.mxu0
        %v689 = vadd.f32 %v617, %v688
        %690 = vmatmul.bf16.gmra.mxu0 %v594
        %v691 = vpop.f32.mrf.mxu0
        %v692 = vadd.f32 %v617, %v691
        %v693 = vpop.f32.mrf.mxu0
        %v694 = vadd.f32 %v617, %v693
        %695 = vmatmul.bf16.gmra.mxu0 %v595
        %v696 = vpop.f32.mrf.mxu0
        %v697 = vadd.f32 %v617, %v696
        %v698 = vpop.f32.mrf.mxu0
        %v699 = vadd.f32 %v617, %v698
        %700 = vmatmul.bf16.gmra.mxu0 %v596
        %v701 = vpop.f32.mrf.mxu0
        %v702 = vadd.f32 %v617, %v701
        %v703 = vpop.f32.mrf.mxu0
        %v704 = vadd.f32 %v617, %v703
        %705 = vmatmul.bf16.gmra.mxu0 %v597
        %v706 = vpop.f32.mrf.mxu0
        %v707 = vadd.f32 %v617, %v706
        %v708 = vpop.f32.mrf.mxu0
        %v709 = vadd.f32 %v617, %v708
        %710 = vmatmul.bf16.gmra.mxu0 %v598
        %v711 = vpop.f32.mrf.mxu0
        %v712 = vadd.f32 %v617, %v711
        %v713 = vpop.f32.mrf.mxu0
        %v714 = vadd.f32 %v617, %v713
        %715 = vdwg.mxu0
        %v716 = vmul.f32 %v677, 0.01
        %v717 = vmul.f32 %v679, 0.01
        %v718 = vmul.f32 %v682, 0.01
        %v719 = vmul.f32 %v684, 0.01
        %v720 = vmul.f32 %v687, 0.01
        %v721 = vmul.f32 %v689, 0.01
        %v722 = vmul.f32 %v692, 0.01
        %v723 = vmul.f32 %v694, 0.01
        %v724 = vmul.f32 %v697, 0.01
        %v725 = vmul.f32 %v699, 0.01
        %v726 = vmul.f32 %v702, 0.01
        %v727 = vmul.f32 %v704, 0.01
        %v728 = vmul.f32 %v707, 0.01
        %v729 = vmul.f32 %v709, 0.01
        %v730 = vmul.f32 %v712, 0.01
        %v731 = vmul.f32 %v714, 0.01
        %v732 = vmax.f32 %v677, %v716
        %v733 = vmax.f32 %v679, %v717
        %v734 = vmax.f32 %v682, %v718
        %v735 = vmax.f32 %v684, %v719
        %v736 = vmax.f32 %v687, %v720
        %v737 = vmax.f32 %v689, %v721
        %v738 = vmax.f32 %v692, %v722
        %v739 = vmax.f32 %v694, %v723
        %v740 = vmax.f32 %v697, %v724
        %v741 = vmax.f32 %v699, %v725
        %v742 = vmax.f32 %v702, %v726
        %v743 = vmax.f32 %v704, %v727
        %v744 = vmax.f32 %v707, %v728
        %v745 = vmax.f32 %v709, %v729
        %v746 = vmax.f32 %v712, %v730
        %v747 = vmax.f32 %v714, %v731
        %v748 = vpack.c.bf16 %v733, %v732
        %v749 = vpack.c.bf16 %v735, %v734
        %v750 = vpack.c.bf16 %v737, %v736
        %v751 = vpack.c.bf16 %v739, %v738
        %v752 = vpack.c.bf16 %v741, %v740
        %v753 = vpack.c.bf16 %v743, %v742
        %v754 = vpack.c.bf16 %v745, %v744
        %v755 = vpack.c.bf16 %v747, %v746
        %s756 = scalar_lea.vmem [#allocation8], 64
        %v757 = vld [vmem:[%s756] sm:$0xf]
        %v758 = vld [vmem:[%s756 + $0x4] sm:$0xf]
        %v759 = vld [vmem:[%s756 + $0x8] sm:$0xf]
        %v760 = vld [vmem:[%s756 + $0xc] sm:$0xf]
        %v761 = vld [vmem:[%s756 + $0x10] sm:$0xf]
        %v762 = vld [vmem:[%s756 + $0x14] sm:$0xf]
        %v763 = vld [vmem:[%s756 + $0x18] sm:$0xf]
        %v764 = vld [vmem:[%s756 + $0x1c] sm:$0xf]
        %v765 = vld [vmem:[%s756 + $0x20] sm:$0xf]
        %v766 = vld [vmem:[%s756 + $0x24] sm:$0xf]
        %v767 = vld [vmem:[%s756 + $0x28] sm:$0xf]
        %v768 = vld [vmem:[%s756 + $0x2c] sm:$0xf]
        %v769 = vld [vmem:[%s756 + $0x30] sm:$0xf]
        %v770 = vld [vmem:[%s756 + $0x34] sm:$0xf]
        %v771 = vld [vmem:[%s756 + $0x38] sm:$0xf]
        %v772 = vld [vmem:[%s756 + $0x3c] sm:$0xf]
        %s773 = scalar_lea.vmem %s4, 1
        %v774 = vld [vmem:[%s773] sm:$0x1]
        %v776 = vperm.slane %v774, 0
        %v794 = vunpack.c.l.b16 %v757
        %v795 = vunpack.c.l.b16 %v758
        %v796 = vunpack.c.l.b16 %v759
        %v797 = vunpack.c.l.b16 %v760
        %v798 = vunpack.c.l.b16 %v761
        %v799 = vunpack.c.l.b16 %v762
        %v800 = vunpack.c.l.b16 %v763
        %v801 = vunpack.c.l.b16 %v764
        %v802 = vunpack.c.l.b16 %v765
        %v803 = vunpack.c.l.b16 %v766
        %v804 = vunpack.c.l.b16 %v767
        %v805 = vunpack.c.l.b16 %v768
        %v806 = vunpack.c.l.b16 %v769
        %v807 = vunpack.c.l.b16 %v770
        %v808 = vunpack.c.l.b16 %v771
        %v809 = vunpack.c.l.b16 %v772
        %v810 = vpack.c.b16 %v795, %v794
        %v811 = vpack.c.b16 %v797, %v796
        %v812 = vpack.c.b16 %v799, %v798
        %v813 = vpack.c.b16 %v801, %v800
        %v814 = vpack.c.b16 %v803, %v802
        %v815 = vpack.c.b16 %v805, %v804
        %v816 = vpack.c.b16 %v807, %v806
        %v817 = vpack.c.b16 %v809, %v808
        %826 = vmatpush.bf16.msra.mxu0 %v817
        %827 = vmatpush.bf16.msra.mxu0 %v816
        %828 = vmatpush.bf16.msra.mxu0 %v815
        %829 = vmatpush.bf16.msra.mxu0 %v814
        %830 = vmatpush.bf16.msra.mxu0 %v813
        %831 = vmatpush.bf16.msra.mxu0 %v812
        %832 = vmatpush.bf16.msra.mxu0 %v811
        %833 = vmatpush.bf16.msra.mxu0 %v810
        %834 = vmatmul.bf16.gmra.mxu0 %v748
        %v835 = vpop.f32.mrf.mxu0
        %v836 = vadd.f32 %v776, %v835
        %v837 = vpop.f32.mrf.mxu0
        %v838 = vadd.f32 %v776, %v837
        %839 = vmatmul.bf16.gmra.mxu0 %v749
        %v840 = vpop.f32.mrf.mxu0
        %v841 = vadd.f32 %v776, %v840
        %v842 = vpop.f32.mrf.mxu0
        %v843 = vadd.f32 %v776, %v842
        %844 = vmatmul.bf16.gmra.mxu0 %v750
        %v845 = vpop.f32.mrf.mxu0
        %v846 = vadd.f32 %v776, %v845
        %v847 = vpop.f32.mrf.mxu0
        %v848 = vadd.f32 %v776, %v847
        %849 = vmatmul.bf16.gmra.mxu0 %v751
        %v850 = vpop.f32.mrf.mxu0
        %v851 = vadd.f32 %v776, %v850
        %v852 = vpop.f32.mrf.mxu0
        %v853 = vadd.f32 %v776, %v852
        %854 = vmatmul.bf16.gmra.mxu0 %v752
        %v855 = vpop.f32.mrf.mxu0
        %v856 = vadd.f32 %v776, %v855
        %v857 = vpop.f32.mrf.mxu0
        %v858 = vadd.f32 %v776, %v857
        %859 = vmatmul.bf16.gmra.mxu0 %v753
        %v860 = vpop.f32.mrf.mxu0
        %v861 = vadd.f32 %v776, %v860
        %v862 = vpop.f32.mrf.mxu0
        %v863 = vadd.f32 %v776, %v862
        %864 = vmatmul.bf16.gmra.mxu0 %v754
        %v865 = vpop.f32.mrf.mxu0
        %v866 = vadd.f32 %v776, %v865
        %v867 = vpop.f32.mrf.mxu0
        %v868 = vadd.f32 %v776, %v867
        %869 = vmatmul.bf16.gmra.mxu0 %v755
        %v870 = vpop.f32.mrf.mxu0
        %v871 = vadd.f32 %v776, %v870
        %v872 = vpop.f32.mrf.mxu0
        %v873 = vadd.f32 %v776, %v872
        %874 = vdwg.mxu0
        %v875 = vmul.f32 %v836, 0.01
        %v876 = vmul.f32 %v838, 0.01
        %v877 = vmul.f32 %v841, 0.01
        %v878 = vmul.f32 %v843, 0.01
        %v879 = vmul.f32 %v846, 0.01
        %v880 = vmul.f32 %v848, 0.01
        %v881 = vmul.f32 %v851, 0.01
        %v882 = vmul.f32 %v853, 0.01
        %v883 = vmul.f32 %v856, 0.01
        %v884 = vmul.f32 %v858, 0.01
        %v885 = vmul.f32 %v861, 0.01
        %v886 = vmul.f32 %v863, 0.01
        %v887 = vmul.f32 %v866, 0.01
        %v888 = vmul.f32 %v868, 0.01
        %v889 = vmul.f32 %v871, 0.01
        %v890 = vmul.f32 %v873, 0.01
        %v891 = vmax.f32 %v836, %v875
        %v892 = vmax.f32 %v838, %v876
        %v893 = vmax.f32 %v841, %v877
        %v894 = vmax.f32 %v843, %v878
        %v895 = vmax.f32 %v846, %v879
        %v896 = vmax.f32 %v848, %v880
        %v897 = vmax.f32 %v851, %v881
        %v898 = vmax.f32 %v853, %v882
        %v899 = vmax.f32 %v856, %v883
        %v900 = vmax.f32 %v858, %v884
        %v901 = vmax.f32 %v861, %v885
        %v902 = vmax.f32 %v863, %v886
        %v903 = vmax.f32 %v866, %v887
        %v904 = vmax.f32 %v868, %v888
        %v905 = vmax.f32 %v871, %v889
        %v906 = vmax.f32 %v873, %v890
        %v907 = vadd.f32 %v471, %v891
        %v908 = vadd.f32 %v473, %v892
        %v909 = vadd.f32 %v476, %v893
        %v910 = vadd.f32 %v478, %v894
        %v911 = vadd.f32 %v481, %v895
        %v912 = vadd.f32 %v483, %v896
        %v913 = vadd.f32 %v486, %v897
        %v914 = vadd.f32 %v488, %v898
        %v915 = vadd.f32 %v491, %v899
        %v916 = vadd.f32 %v493, %v900
        %v917 = vadd.f32 %v496, %v901
        %v918 = vadd.f32 %v498, %v902
        %v919 = vadd.f32 %v501, %v903
        %v920 = vadd.f32 %v503, %v904
        %v921 = vadd.f32 %v506, %v905
        %v922 = vadd.f32 %v508, %v906
        %923 = vst [vmem:[%s292] sm:$0xff] %v907
        %924 = vst [vmem:[%s292 + $0x8] sm:$0xff] %v908
        %925 = vst [vmem:[%s292 + $0x10] sm:$0xff] %v909
        %926 = vst [vmem:[%s292 + $0x18] sm:$0xff] %v910
        %927 = vst [vmem:[%s292 + $0x20] sm:$0xff] %v911
        %928 = vst [vmem:[%s292 + $0x28] sm:$0xff] %v912
        %929 = vst [vmem:[%s292 + $0x30] sm:$0xff] %v913
        %930 = vst [vmem:[%s292 + $0x38] sm:$0xff] %v914
        %931 = vst [vmem:[%s292 + $0x40] sm:$0xff] %v915
        %932 = vst [vmem:[%s292 + $0x48] sm:$0xff] %v916
        %933 = vst [vmem:[%s292 + $0x50] sm:$0xff] %v917
        %934 = vst [vmem:[%s292 + $0x58] sm:$0xff] %v918
        %935 = vst [vmem:[%s292 + $0x60] sm:$0xff] %v919
        %936 = vst [vmem:[%s292 + $0x68] sm:$0xff] %v920
        %937 = vst [vmem:[%s292 + $0x70] sm:$0xff] %v921
        %938 = vst [vmem:[%s292 + $0x78] sm:$0xff] %v922
        %s939 = sand.u32 %s142, 1
        %s940 = scalar_lea.sflag [#allocation4], %s939
        %s941 = sand.u32 %s142, 1
        %s942 = smul.addr %s941, 128
        %s943 = scalar_lea.vmem [#allocation10], %s942
        // Predicated region
        $region57: #{tpu_custom_call.1} parent=39 // pred_check
          %p944 = pneg %p152
        $region58: #{tpu_custom_call.1} parent=39 // pred_check_branch
          %946 = sbr.rel (%p944) target = $region60
        $region59: #{tpu_custom_call.1} parent=39 // pred_region
          %s947 = smul.u32 16, %s24
          %949 = vsyncadd %s940, 0
          %s950 = smul.addr %s947, 8
          %s951 = scalar_lea.hbm %s5, %s950
          %s952 = sshll.u32 %s943, 4
          %s953 = int_to_ptr.vmem [resolvable:$true] %s952
          %s954 = sshll.u32 %s951, 4
          %s955 = int_to_ptr.hbm [resolvable:$true] %s954
          %960 = dma.vmem_to_hbm [thread:$0]  %s953, 2048, %s955, %s940, 128, 128, 8
        $region60: #{tpu_custom_call.1} parent=39 // pred_fallthru
          _
      $region40: #{tpu_custom_call.1} parent=5 // pred_fallthru
        _
      %p961 = scmp.le.s32.totalorder 2, %s19
      // Predicated region
      $region61: #{tpu_custom_call.1} parent=5 // pred_check
        %p962 = pneg %p961
      $region62: #{tpu_custom_call.1} parent=5 // pred_check_branch
        %964 = sbr.rel (%p962) target = $region64
      $region63: #{tpu_custom_call.1} parent=5 // pred_region
        %s965 = ssub.s32 %s19, 2
        // Predicated region
        $region65: #{tpu_custom_call.1} parent=63 // pred_check
          %p966 = pneg %p158
        $region66: #{tpu_custom_call.1} parent=63 // pred_check_branch
          %968 = sbr.rel (%p966) target = $region68
        $region67: #{tpu_custom_call.1} parent=63 // pred_region
          %s969 = sand.u32 %s143, 1
          %s970 = scalar_lea.sflag [#allocation4], %s969
          %s971 = sand.u32 %s143, 1
          %s972 = smul.addr %s971, 128
          %s973 = scalar_lea.vmem [#allocation10], %s972
          %975 = dma.done %s970, 2048
        $region68: #{tpu_custom_call.1} parent=63 // pred_fallthru
          _
      $region64: #{tpu_custom_call.1} parent=5 // pred_fallthru
        _
    $region6: #{tpu_custom_call.1} parent=1 // loop_footer
      %s23 = sadd.s32 1, %s19
    $region7: #{tpu_custom_call.1} parent=1 // loop_footer_branch
      %18 = sbr.rel target = $region3
    $region8: #{tpu_custom_call.1} parent=1 // loop_exit
      _
    %976 = vsyncpa [#allocation3], 1
    %s977 = scalar_lea.sflag [#allocation3], 1
    %978 = vsyncpa %s977, 1
    %979 = vsyncpa [#allocation6], 1
    %980 = vsyncpa [#allocation9], 1
    %981 = vsyncpa [#allocation4], 1
    %s982 = scalar_lea.sflag [#allocation4], 1
    %983 = vsyncpa %s982, 1

</llo_original>
